<compile_context>
chip_gen: v7x
topology: tpu7x:2x2x1
jax: 0.10.0
libtpu: 0.0.40
codegen_flags: <defaults>
</compile_context>

<pallas_src>
import math

import jax
import jax.numpy as jnp
from jax import lax
from jax.experimental import pallas as pl
from jax.experimental.pallas import tpu as pltpu


def pairwise_bilinear_kernel(x1t_ref, x2_ref, w2t_ref, bias_ref, o_ref, ut_ref):
    # x1t_ref : (d1, tn1)      input1 tile, transposed in the wrapper
    # x2_ref  : (n2, d2)       input2 row for this batch element (as-is)
    # w2t_ref : (to*d2, d1)    weight tile, (channel, d2)-major rows, d1 on lanes
    # bias_ref: (out,)         full bias vector in SMEM
    # o_ref   : (to, n2, tn1)  output tile of the (B, out, n2, n1) kernel layout
    # ut_ref  : (to*d2, tn1)   f32 scratch holding U^T for all channels of the tile
    to = o_ref.shape[0]
    d2 = x2_ref.shape[1]
    n_out = bias_ref.shape[0]
    oi = pl.program_id(1)  # out-tile index (for the global bias channel)

    # Stage 1: ONE wide MXU matmul covering all `to` output channels.
    #   U^T[(o,e), i] = sum_d weight[d, o, e] * input1[b, i, d]
    ut_ref[...] = jnp.dot(w2t_ref[...], x1t_ref[...],
                          preferred_element_type=jnp.float32)

    x2 = x2_ref[...]
    # Stage 2: per-channel plain NN matmul against the shared x2 operand.
    #   y[b, i, j, o] = sum_e input2[b, j, e] * U^T[(o,e), i] + bias[o]
    for o in range(to):                        # static & small -> fully unrolled
        u_o = ut_ref[pl.ds(o * d2, d2), :]     # sublane slice, static offset o*d2
        s_t = jnp.dot(x2, u_o, preferred_element_type=jnp.float32)  # (n2, tn1)
        b_idx = jnp.minimum(oi * to + o, n_out - 1)  # clamp for padded out tiles
        o_ref[o] = (s_t + bias_ref[b_idx]).astype(o_ref.dtype)


def pairwise_bilinear(input1, input2, weight, bias, *, n1_tile=256, out_tile=16):
    """input1: (B, n1, d1), input2: (B, n2, d2), weight: (d1, out, d2), bias: (out,)."""
    B, n1, d1 = input1.shape
    B2, n2, d2 = input2.shape
    d1w, out_features, d2w = weight.shape
    assert B == B2 and d1 == d1w and d2 == d2w and bias.shape == (out_features,)

    tn1 = min(n1, n1_tile)
    to = min(out_features, out_tile)
    n1_tiles = pl.cdiv(n1, tn1)
    out_tiles = pl.cdiv(out_features, to)

    # Hoisted, batch-invariant weight relayout: (d1, out, d2) -> (out*d2, d1).
    w2t = jnp.transpose(weight, (1, 2, 0)).reshape(out_features * d2, d1)
    # Layout plumbing on the small input: (B, n1, d1) -> (B, d1, n1) so stage 1 is NN.
    x1t = jnp.transpose(input1, (0, 2, 1))

    out_k = pl.pallas_call(
        pairwise_bilinear_kernel,
        out_shape=jax.ShapeDtypeStruct((B, out_features, n2, n1), input1.dtype),
        grid_spec=pltpu.PrefetchScalarGridSpec(
            num_scalar_prefetch=0,
            grid=(B, out_tiles, n1_tiles),
            in_specs=[
                # input1^T tile: refetched per n1-tile (the small streaming operand).
                pl.BlockSpec((None, d1, tn1), lambda b, oi, i: (b, 0, i)),
                # input2 row: constant index within a batch step -> resident in VMEM.
                pl.BlockSpec((None, n2, d2), lambda b, oi, i: (b, 0, 0)),
                # Weight tile: constant across (b, i) -> DMA'd once per out-tile.
                pl.BlockSpec((to * d2, d1), lambda b, oi, i: (oi, 0)),
                # Bias lives in SMEM (scalar reads).
                pl.BlockSpec(memory_space=pltpu.MemorySpace.SMEM),
            ],
            out_specs=pl.BlockSpec((None, to, n2, tn1),
                                   lambda b, oi, i: (b, oi, 0, i)),
            scratch_shapes=[pltpu.VMEM((to * d2, tn1), jnp.float32)],
        ),
        compiler_params=pltpu.CompilerParams(
            dimension_semantics=("parallel", "parallel", "parallel"),
            vmem_limit_bytes=32 * 1024 * 1024,
        ),
    )(x1t, input2, w2t, bias)

    # Wrapper-side layout plumbing to the module's layout:
    # (B, out, n2, n1) -> (B, n1, n2, out).  Downstream consumers that can take the
    # kernel layout directly should skip this (saves a full HBM pass).
    return jnp.transpose(out_k, (0, 3, 2, 1))


def reference(input1, input2, weight, bias):
    y = jnp.einsum('bid,doe,bje->bijo', input1, weight, input2,
                   precision=lax.Precision.HIGHEST)
    return y + bias


if __name__ == "__main__":
    B = 2
    seq = 8                       # n1 == n2
    in1_features = in2_features = 32
    out_features = 4

    key = jax.random.PRNGKey(0)
    k1, k2, kw, kb = jax.random.split(key, 4)

    # Mirrors reset_parameters(): uniform(-bound, bound), bound = 1/sqrt(in1_features).
    bound = 1.0 / math.sqrt(in1_features)
    weight = jax.random.uniform(kw, (in1_features, out_features, in2_features),
                                dtype=jnp.float32, minval=-bound, maxval=bound)
    bias = jax.random.uniform(kb, (out_features,),
                              dtype=jnp.float32, minval=-bound, maxval=bound)

    input1 = jax.random.normal(k1, (B, seq, in1_features), dtype=jnp.float32)
    input2 = jax.random.normal(k2, (B, seq, in2_features), dtype=jnp.float32)

    out = pairwise_bilinear(input1, input2, weight, bias)
    out = jax.block_until_ready(out)

    ref = reference(input1, input2, weight, bias)
    assert out.shape == ref.shape == (B, seq, seq, out_features)
    # Default-precision MXU matmuls (bf16-class passes) vs. a HIGHEST-precision
    # reference: tolerance loosened per the performance review.
    assert jnp.allclose(out, ref, atol=5e-2, rtol=5e-2), \
        float(jnp.max(jnp.abs(out - ref)))

    print("KERNEL_OK")
</pallas_src>

<mosaic_0001>
module attributes {stable_mosaic.version = 11 : i64} {
  func.func @pairwise_bilinear_kernel(%arg0: i32, %arg1: i32, %arg2: i32, %arg3: memref<1x32x8xf32, #tpu.memory_space<vmem>>, %arg4: memref<1x8x32xf32, #tpu.memory_space<vmem>>, %arg5: memref<128x32xf32, #tpu.memory_space<vmem>>, %arg6: memref<4xf32, #tpu.memory_space<smem>>, %arg7: memref<1x4x8x8xf32, #tpu.memory_space<vmem>>, %arg8: memref<128x8xf32, #tpu.memory_space<vmem>>) attributes {dimension_semantics = [#tpu.dimension_semantics<parallel>, #tpu.dimension_semantics<parallel>, #tpu.dimension_semantics<parallel>], iteration_bounds = array<i64: 2, 1, 1>, scalar_prefetch = 0 : i64, scratch_operands = 1 : i64, tpu.core_type = #tpu.core_type<tc>, window_params = [{transform_indices = @transform_0, window_bounds = array<i64: 1, 32, 8>}, {transform_indices = @transform_1, window_bounds = array<i64: 1, 8, 32>}, {transform_indices = @transform_2, window_bounds = array<i64: 128, 32>}, {transform_indices = @transform_3, window_bounds = array<i64: 4>}, {transform_indices = @transform_4, window_bounds = array<i64: 1, 4, 8, 8>}]} {
    %c0 = arith.constant 0 : index
    %c0_0 = arith.constant 0 : index
    %0 = vector.load %arg5[%c0, %c0_0] : memref<128x32xf32, #tpu.memory_space<vmem>>, vector<128x32xf32>
    %c0_1 = arith.constant 0 : index
    %c0_2 = arith.constant 0 : index
    %c0_3 = arith.constant 0 : index
    %1 = vector.load %arg3[%c0_1, %c0_2, %c0_3] : memref<1x32x8xf32, #tpu.memory_space<vmem>>, vector<1x32x8xf32>
    %2 = vector.shape_cast %1 : vector<1x32x8xf32> to vector<32x8xf32>
    %cst = arith.constant dense<0.000000e+00> : vector<128x8xf32>
    %3 = tpu.matmul %0, %2, %cst {dimension_numbers = #tpu.dot_dimension_numbers<[1], [0], [0], [1], [0, 0, 1, 1], [], []>} : vector<128x32xf32>, vector<32x8xf32>, vector<128x8xf32> -> vector<128x8xf32>
    %c0_4 = arith.constant 0 : index
    %c0_5 = arith.constant 0 : index
    %4 = vector.load %arg8[%c0_4, %c0_5] : memref<128x8xf32, #tpu.memory_space<vmem>>, vector<128x8xf32>
    tpu.vector_store %arg8[%c0_4, %c0_5], %3 {strides = array<i32>} : memref<128x8xf32, #tpu.memory_space<vmem>>, vector<128x8xf32>,
    %c0_6 = arith.constant 0 : index
    %c0_7 = arith.constant 0 : index
    %c0_8 = arith.constant 0 : index
    %5 = vector.load %arg4[%c0_6, %c0_7, %c0_8] : memref<1x8x32xf32, #tpu.memory_space<vmem>>, vector<1x8x32xf32>
    %6 = vector.shape_cast %5 : vector<1x8x32xf32> to vector<8x32xf32>
    %c0_9 = arith.constant 0 : index
    %c0_10 = arith.constant 0 : index
    %7 = vector.load %arg8[%c0_9, %c0_10] : memref<128x8xf32, #tpu.memory_space<vmem>>, vector<32x8xf32>
    %cst_11 = arith.constant dense<0.000000e+00> : vector<8x8xf32>
    %8 = tpu.matmul %6, %7, %cst_11 {dimension_numbers = #tpu.dot_dimension_numbers<[1], [0], [0], [1], [0, 0, 1, 1], [], []>} : vector<8x32xf32>, vector<32x8xf32>, vector<8x8xf32> -> vector<8x8xf32>
    %c4_i32 = arith.constant 4 : i32
    %9 = arith.muli %arg1, %c4_i32 : i32
    %c0_i32 = arith.constant 0 : i32
    %10 = arith.addi %9, %c0_i32 : i32
    %c3_i32 = arith.constant 3 : i32
    %11 = arith.minsi %10, %c3_i32 : i32
    %12 = arith.index_cast %11 : i32 to index
    %13 = memref.load %arg6[%12] : memref<4xf32, #tpu.memory_space<smem>>
    %14 = vector.broadcast %13 : f32 to vector<8x8xf32>
    %15 = arith.addf %8, %14 : vector<8x8xf32>
    %c0_12 = arith.constant 0 : index
    %c0_13 = arith.constant 0 : index
    %c0_14 = arith.constant 0 : index
    %c0_15 = arith.constant 0 : index
    %16 = vector.load %arg7[%c0_12, %c0_13, %c0_14, %c0_15] : memref<1x4x8x8xf32, #tpu.memory_space<vmem>>, vector<1x1x8x8xf32>
    %17 = vector.shape_cast %16 : vector<1x1x8x8xf32> to vector<8x8xf32>
    %18 = vector.shape_cast %15 : vector<8x8xf32> to vector<1x1x8x8xf32>
    tpu.vector_store %arg7[%c0_12, %c0_13, %c0_14, %c0_15], %18 {strides = array<i32>} : memref<1x4x8x8xf32, #tpu.memory_space<vmem>>, vector<1x1x8x8xf32>,
    %c32 = arith.constant 32 : index
    %c0_16 = arith.constant 0 : index
    %19 = vector.load %arg8[%c32, %c0_16] : memref<128x8xf32, #tpu.memory_space<vmem>>, vector<32x8xf32>
    %cst_17 = arith.constant dense<0.000000e+00> : vector<8x8xf32>
    %20 = tpu.matmul %6, %19, %cst_17 {dimension_numbers = #tpu.dot_dimension_numbers<[1], [0], [0], [1], [0, 0, 1, 1], [], []>} : vector<8x32xf32>, vector<32x8xf32>, vector<8x8xf32> -> vector<8x8xf32>
    %c4_i32_18 = arith.constant 4 : i32
    %21 = arith.muli %arg1, %c4_i32_18 : i32
    %c1_i32 = arith.constant 1 : i32
    %22 = arith.addi %21, %c1_i32 : i32
    %c3_i32_19 = arith.constant 3 : i32
    %23 = arith.minsi %22, %c3_i32_19 : i32
    %24 = arith.index_cast %23 : i32 to index
    %25 = memref.load %arg6[%24] : memref<4xf32, #tpu.memory_space<smem>>
    %26 = vector.broadcast %25 : f32 to vector<8x8xf32>
    %27 = arith.addf %20, %26 : vector<8x8xf32>
    %c0_20 = arith.constant 0 : index
    %c1 = arith.constant 1 : index
    %c0_21 = arith.constant 0 : index
    %c0_22 = arith.constant 0 : index
    %28 = vector.load %arg7[%c0_20, %c1, %c0_21, %c0_22] : memref<1x4x8x8xf32, #tpu.memory_space<vmem>>, vector<1x1x8x8xf32>
    %29 = vector.shape_cast %28 : vector<1x1x8x8xf32> to vector<8x8xf32>
    %30 = vector.shape_cast %27 : vector<8x8xf32> to vector<1x1x8x8xf32>
    tpu.vector_store %arg7[%c0_20, %c1, %c0_21, %c0_22], %30 {strides = array<i32>} : memref<1x4x8x8xf32, #tpu.memory_space<vmem>>, vector<1x1x8x8xf32>,
    %c64 = arith.constant 64 : index
    %c0_23 = arith.constant 0 : index
    %31 = vector.load %arg8[%c64, %c0_23] : memref<128x8xf32, #tpu.memory_space<vmem>>, vector<32x8xf32>
    %cst_24 = arith.constant dense<0.000000e+00> : vector<8x8xf32>
    %32 = tpu.matmul %6, %31, %cst_24 {dimension_numbers = #tpu.dot_dimension_numbers<[1], [0], [0], [1], [0, 0, 1, 1], [], []>} : vector<8x32xf32>, vector<32x8xf32>, vector<8x8xf32> -> vector<8x8xf32>
    %c4_i32_25 = arith.constant 4 : i32
    %33 = arith.muli %arg1, %c4_i32_25 : i32
    %c2_i32 = arith.constant 2 : i32
    %34 = arith.addi %33, %c2_i32 : i32
    %c3_i32_26 = arith.constant 3 : i32
    %35 = arith.minsi %34, %c3_i32_26 : i32
    %36 = arith.index_cast %35 : i32 to index
    %37 = memref.load %arg6[%36] : memref<4xf32, #tpu.memory_space<smem>>
    %38 = vector.broadcast %37 : f32 to vector<8x8xf32>
    %39 = arith.addf %32, %38 : vector<8x8xf32>
    %c0_27 = arith.constant 0 : index
    %c2 = arith.constant 2 : index
    %c0_28 = arith.constant 0 : index
    %c0_29 = arith.constant 0 : index
    %40 = vector.load %arg7[%c0_27, %c2, %c0_28, %c0_29] : memref<1x4x8x8xf32, #tpu.memory_space<vmem>>, vector<1x1x8x8xf32>
    %41 = vector.shape_cast %40 : vector<1x1x8x8xf32> to vector<8x8xf32>
    %42 = vector.shape_cast %39 : vector<8x8xf32> to vector<1x1x8x8xf32>
    tpu.vector_store %arg7[%c0_27, %c2, %c0_28, %c0_29], %42 {strides = array<i32>} : memref<1x4x8x8xf32, #tpu.memory_space<vmem>>, vector<1x1x8x8xf32>,
    %c96 = arith.constant 96 : index
    %c0_30 = arith.constant 0 : index
    %43 = vector.load %arg8[%c96, %c0_30] : memref<128x8xf32, #tpu.memory_space<vmem>>, vector<32x8xf32>
    %cst_31 = arith.constant dense<0.000000e+00> : vector<8x8xf32>
    %44 = tpu.matmul %6, %43, %cst_31 {dimension_numbers = #tpu.dot_dimension_numbers<[1], [0], [0], [1], [0, 0, 1, 1], [], []>} : vector<8x32xf32>, vector<32x8xf32>, vector<8x8xf32> -> vector<8x8xf32>
    %c4_i32_32 = arith.constant 4 : i32
    %45 = arith.muli %arg1, %c4_i32_32 : i32
    %c3_i32_33 = arith.constant 3 : i32
    %46 = arith.addi %45, %c3_i32_33 : i32
    %c3_i32_34 = arith.constant 3 : i32
    %47 = arith.minsi %46, %c3_i32_34 : i32
    %48 = arith.index_cast %47 : i32 to index
    %49 = memref.load %arg6[%48] : memref<4xf32, #tpu.memory_space<smem>>
    %50 = vector.broadcast %49 : f32 to vector<8x8xf32>
    %51 = arith.addf %44, %50 : vector<8x8xf32>
    %c0_35 = arith.constant 0 : index
    %c3 = arith.constant 3 : index
    %c0_36 = arith.constant 0 : index
    %c0_37 = arith.constant 0 : index
    %52 = vector.load %arg7[%c0_35, %c3, %c0_36, %c0_37] : memref<1x4x8x8xf32, #tpu.memory_space<vmem>>, vector<1x1x8x8xf32>
    %53 = vector.shape_cast %52 : vector<1x1x8x8xf32> to vector<8x8xf32>
    %54 = vector.shape_cast %51 : vector<8x8xf32> to vector<1x1x8x8xf32>
    tpu.vector_store %arg7[%c0_35, %c3, %c0_36, %c0_37], %54 {strides = array<i32>} : memref<1x4x8x8xf32, #tpu.memory_space<vmem>>, vector<1x1x8x8xf32>,
    return
  }
  func.func @transform_0(%arg0: i32, %arg1: i32, %arg2: i32) -> (i32, i32, i32) {
    %c0_i32 = arith.constant 0 : i32
    %c0_i32_0 = arith.constant 0 : i32
    return %arg0, %c0_i32, %arg2 : i32, i32, i32
  }
  func.func @transform_1(%arg0: i32, %arg1: i32, %arg2: i32) -> (i32, i32, i32) {
    %c0_i32 = arith.constant 0 : i32
    %c0_i32_0 = arith.constant 0 : i32
    %c0_i32_1 = arith.constant 0 : i32
    return %arg0, %c0_i32, %c0_i32_0 : i32, i32, i32
  }
  func.func @transform_2(%arg0: i32, %arg1: i32, %arg2: i32) -> (i32, i32) {
    %c0_i32 = arith.constant 0 : i32
    %c0_i32_0 = arith.constant 0 : i32
    return %arg1, %c0_i32 : i32, i32
  }
  func.func @transform_3(%arg0: i32, %arg1: i32, %arg2: i32) -> i32 {
    %c0_i32 = arith.constant 0 : i32
    %c0_i32_0 = arith.constant 0 : i32
    return %c0_i32 : i32
  }
  func.func @transform_4(%arg0: i32, %arg1: i32, %arg2: i32) -> (i32, i32, i32, i32) {
    %c0_i32 = arith.constant 0 : i32
    %c0_i32_0 = arith.constant 0 : i32
    return %arg0, %arg1, %c0_i32, %arg2 : i32, i32, i32, i32
  }
}

</mosaic_0001>

<llo_original>
// kernel: tpu_custom_call.1
$region0: #{tpu_custom_call.1}
  #allocation0 [shape = 'u32[]', space=smem, size = 0x4, offset = 0x4, fixed_abs, tag = 'smem constant byte address 0x4 - core index']
  #allocation1 [shape = 'u32[144,128]{1,0:T(1,128)}', space=vmem, size = 0x12000, scoped, tag = 'internal scratch']
  #allocation2 [shape = 'f32[128,8]{1,0:T(8,128)}', space=vmem, size = 0x10000, scoped, tag = 'scratch operand']
  %s0 = inlined_call_operand.vmem [shape: f32[2,32,8], index: 0, kind: input, shape index: {}]
  %s1 = inlined_call_operand.vmem [shape: f32[2,8,32], index: 1, kind: input, shape index: {}]
  %s2 = inlined_call_operand.vmem [shape: f32[128,32], index: 2, kind: input, shape index: {}]
  %s3 = inlined_call_operand.vmem [shape: f32[4], index: 3, kind: input, shape index: {}]
  %s4 = inlined_call_operand.hbm [shape: f32[2,4,8,8], index: 4, kind: output, shape index: {}]
  %s5 = sld [smem:[#allocation0]]
  $region53: #{tpu_custom_call.1} parent=0
    _
  %s7 = ssub.s32 1, %s5
  %s8 = scalar_select 0, %s7, %s5
  $region1: #{tpu_custom_call.1} parent=0
    #allocation3 [shape = 'u8[512]{0}', space=smem, size = 0x200, scoped, tag = 'input window, operand 3, single buffered']
    #allocation4 [shape = 's32[2]{0}', space=sflag, size = 0x8, scoped, tag = 'scoped memory for tpu_custom_call.1']
    #allocation5 [shape = 's32[2]{0}', space=sflag, size = 0x8, scoped, tag = 'scoped memory for tpu_custom_call.1']
    #allocation6 [shape = 'u8[32768]{0}', space=vmem, size = 0x8000, scoped, tag = 'output window, operand 0']
    %9 = vsyncpa [#allocation5], 0
    %10 = vsyncpa [#allocation4], 0
    %s11 = scalar_lea.sflag [#allocation4], 1
    %12 = vsyncpa %s11, 0
    loop: start=0, step=1, limit=4
    $region2: #{tpu_custom_call.1} parent=1 // loop_pre_header
      _
    $region3: #{tpu_custom_call.1} parent=1 // loop_header
      %s14 = sphi 0, %s18
      %p15 = scmp.ge.s32.totalorder %s14, 4
      %s21 = sphi 0, %s40
      %s22 = sphi 0, %s36
      %s23 = sphi 0, %s32
      %s24 = sphi 0, %s21
      %s25 = sphi 0, %s22
      %s26 = sphi 0, %s23
      %s27 = sphi 0, %s24
      %s28 = sphi 0, %s25
      %s29 = sphi 0, %s26
      %s45 = sphi 0, %s47
      %s48 = sphi 0, %s45
      %s49 = sphi 0, %s48
      %s65 = sphi 0, %s49
      %s71 = sphi 0, %s73
      %s74 = sphi 0, %s71
      %s75 = sphi 0, %s74
      %s91 = sphi 0, %s75
      %s97 = sphi 0, %s99
      %s100 = sphi 0, %s97
      %s101 = sphi 0, %s100
      %s117 = sphi 0, %s101
      %s121 = sphi 0, %s121
      %s123 = sphi 0, %s121
      %s124 = sphi 0, %s123
      %s138 = sphi 0, %s124
      %s148 = sphi 0, %s150
      %s151 = sphi 0, %s148
      %s152 = sphi 0, %s151
      %s168 = sphi 0, %s152
    $region4: #{tpu_custom_call.1} parent=1 // loop_header_branch
      %17 = sbr.rel (%p15) target = $region8
    $region5: #{tpu_custom_call.1} parent=1 // loop_body
      %s19 = ssub.s32 %s14, 1
      %s20 = ssub.s32 %s14, 2
      %s30 = sadd.s32 1, %s23
      %p31 = scmp.ge.s32.totalorder %s30, 1
      %s32 = scalar_select %p31, 0, %s30
      %s33 = sadd.s32 1, %s22
      %s34 = scalar_select %p31, %s33, %s22
      %p35 = scmp.ge.s32.totalorder %s34, 1
      %s36 = scalar_select %p35, 0, %s34
      %s37 = sadd.s32 1, %s21
      %s38 = scalar_select %p35, %s37, %s21
      %p39 = scmp.ge.s32.totalorder %s38, 2
      %s40 = scalar_select %p39, 0, %s38
      %s41 = ssub.s32 %s21, %s40
      %s42 = ssub.s32 %s23, %s32
      %s43 = sor.u32 %s41, %s42
      %p44 = scmp.eq.s32.totalorder %s43, 0
      %s46 = sadd.s32 %s45, 1
      %s47 = scalar_select %p44, %s45, %s46
      %p50 = pneg %p44
      %p51 = scmp.eq.s32.totalorder %s14, 1
      %p52 = por %p50, %p51
      %p53 = scmp.ne.s32.totalorder %s45, %s48
      %p54 = scmp.eq.s32.totalorder %s14, 0
      %p55 = por %p53, %p54
      %p56 = scmp.ne.s32.totalorder %s45, %s48
      %p57 = scmp.eq.s32.totalorder %s19, 1
      %p58 = por %p56, %p57
      %p59 = scmp.ne.s32.totalorder %s48, %s49
      %p60 = scmp.eq.s32.totalorder %s19, 0
      %p61 = por %p59, %p60
      %p62 = scmp.ne.s32.totalorder %s48, %s49
      %p63 = scmp.eq.s32.totalorder %s20, 1
      %p64 = por %p62, %p63
      %p66 = scmp.ne.s32.totalorder %s49, %s65
      %p67 = scmp.eq.s32.totalorder %s20, 0
      %p68 = por %p66, %p67
      %s69 = ssub.s32 %s21, %s40
      %p70 = scmp.eq.s32.totalorder %s69, 0
      %s72 = sadd.s32 %s71, 1
      %s73 = scalar_select %p70, %s71, %s72
      %p76 = pneg %p70
      %p77 = scmp.eq.s32.totalorder %s14, 1
      %p78 = por %p76, %p77
      %p79 = scmp.ne.s32.totalorder %s71, %s74
      %p80 = scmp.eq.s32.totalorder %s14, 0
      %p81 = por %p79, %p80
      %p82 = scmp.ne.s32.totalorder %s71, %s74
      %p83 = scmp.eq.s32.totalorder %s19, 1
      %p84 = por %p82, %p83
      %p85 = scmp.ne.s32.totalorder %s74, %s75
      %p86 = scmp.eq.s32.totalorder %s19, 0
      %p87 = por %p85, %p86
      %p88 = scmp.ne.s32.totalorder %s74, %s75
      %p89 = scmp.eq.s32.totalorder %s20, 1
      %p90 = por %p88, %p89
      %p92 = scmp.ne.s32.totalorder %s75, %s91
      %p93 = scmp.eq.s32.totalorder %s20, 0
      %p94 = por %p92, %p93
      %s95 = ssub.s32 %s22, %s36
      %p96 = scmp.eq.s32.totalorder %s95, 0
      %s98 = sadd.s32 %s97, 1
      %s99 = scalar_select %p96, %s97, %s98
      %p102 = pneg %p96
      %p103 = scmp.eq.s32.totalorder %s14, 1
      %p104 = por %p102, %p103
      %p105 = scmp.ne.s32.totalorder %s97, %s100
      %p106 = scmp.eq.s32.totalorder %s14, 0
      %p107 = por %p105, %p106
      %p108 = scmp.ne.s32.totalorder %s97, %s100
      %p109 = scmp.eq.s32.totalorder %s19, 1
      %p110 = por %p108, %p109
      %p111 = scmp.ne.s32.totalorder %s100, %s101
      %p112 = scmp.eq.s32.totalorder %s19, 0
      %p113 = por %p111, %p112
      %p114 = scmp.ne.s32.totalorder %s100, %s101
      %p115 = scmp.eq.s32.totalorder %s20, 1
      %p116 = por %p114, %p115
      %p118 = scmp.ne.s32.totalorder %s101, %s117
      %p119 = scmp.eq.s32.totalorder %s20, 0
      %p120 = por %p118, %p119
      %s122 = sadd.s32 %s121, 1
      %p125 = scmp.eq.s32.totalorder %s14, 1
      %p126 = scmp.ne.s32.totalorder %s121, %s123
      %p127 = scmp.eq.s32.totalorder %s14, 0
      %p128 = por %p126, %p127
      %p129 = scmp.ne.s32.totalorder %s121, %s123
      %p130 = scmp.eq.s32.totalorder %s19, 1
      %p131 = por %p129, %p130
      %p132 = scmp.ne.s32.totalorder %s123, %s124
      %p133 = scmp.eq.s32.totalorder %s19, 0
      %p134 = por %p132, %p133
      %p135 = scmp.ne.s32.totalorder %s123, %s124
      %p136 = scmp.eq.s32.totalorder %s20, 1
      %p137 = por %p135, %p136
      %p139 = scmp.ne.s32.totalorder %s124, %s138
      %p140 = scmp.eq.s32.totalorder %s20, 0
      %p141 = por %p139, %p140
      %s142 = ssub.s32 %s21, %s40
      %s143 = ssub.s32 %s22, %s36
      %s144 = sor.u32 %s142, %s143
      %s145 = ssub.s32 %s23, %s32
      %s146 = sor.u32 %s144, %s145
      %p147 = scmp.eq.s32.totalorder %s146, 0
      %s149 = sadd.s32 %s148, 1
      %s150 = scalar_select %p147, %s148, %s149
      %p153 = pneg %p147
      %p154 = scmp.eq.s32.totalorder %s14, 1
      %p155 = por %p153, %p154
      %p156 = scmp.ne.s32.totalorder %s148, %s151
      %p157 = scmp.eq.s32.totalorder %s14, 0
      %p158 = por %p156, %p157
      %p159 = scmp.ne.s32.totalorder %s148, %s151
      %p160 = scmp.eq.s32.totalorder %s19, 1
      %p161 = por %p159, %p160
      %p162 = scmp.ne.s32.totalorder %s151, %s152
      %p163 = scmp.eq.s32.totalorder %s19, 0
      %p164 = por %p162, %p163
      %p165 = scmp.ne.s32.totalorder %s151, %s152
      %p166 = scmp.eq.s32.totalorder %s20, 1
      %p167 = por %p165, %p166
      %p169 = scmp.ne.s32.totalorder %s152, %s168
      %p170 = scmp.eq.s32.totalorder %s20, 0
      %p171 = por %p169, %p170
      %p172 = scmp.le.s32.totalorder 1, %s14
      %p173 = scmp.lt.s32.totalorder %s14, 3
      %p174 = pnand %p172, %p173
      %p175 = pneg %p174
      // Predicated region
      $region9: #{tpu_custom_call.1} parent=5 // pred_check
        _
      $region10: #{tpu_custom_call.1} parent=5 // pred_check_branch
        %177 = sbr.rel (%p174) target = $region12
      $region11: #{tpu_custom_call.1} parent=5 // pred_region
        %s178 = ssub.s32 %s14, 1
        // Predicated region
        $region13: #{tpu_custom_call.1} parent=11 // pred_check
          %p179 = pneg %p113
        $region14: #{tpu_custom_call.1} parent=11 // pred_check_branch
          %181 = sbr.rel (%p179) target = $region16
        $region15: #{tpu_custom_call.1} parent=11 // pred_region
          %s182 = smul.u32 16, %s25
          %p183 = scmp.lt.s32.totalorder %s182, 15
          %s184 = scalar_select %p183, %s182, 15
          %s185 = smul.addr %s184, 8
          %s186 = scalar_lea.vmem %s2, %s185
          %s187 = smul.u32 16, %s25
        $region16: #{tpu_custom_call.1} parent=11 // pred_fallthru
          _
        // Predicated region
        $region17: #{tpu_custom_call.1} parent=11 // pred_check
          %p188 = pneg %p134
        $region18: #{tpu_custom_call.1} parent=11 // pred_check_branch
          %190 = sbr.rel (%p188) target = $region20
        $region19: #{tpu_custom_call.1} parent=11 // pred_region
          %s192 = ssub.s32 16, 16
          %193 = vsyncadd [#allocation5], %s192
          %s195 = sshll.u32 %s3, 4
          %s196 = int_to_ptr.vmem [resolvable:$true] %s195
          %198 = dma.vmem_to_smem %s196, 16, [#allocation3], [#allocation5]
        $region20: #{tpu_custom_call.1} parent=11 // pred_fallthru
          _
      $region12: #{tpu_custom_call.1} parent=5 // pred_fallthru
        _
      %p199 = scmp.lt.s32.totalorder %s14, 2
      // Predicated region
      $region21: #{tpu_custom_call.1} parent=5 // pred_check
        %p200 = pneg %p199
      $region22: #{tpu_custom_call.1} parent=5 // pred_check_branch
        %202 = sbr.rel (%p200) target = $region24
      $region23: #{tpu_custom_call.1} parent=5 // pred_region
        // Predicated region
        $region25: #{tpu_custom_call.1} parent=23 // pred_check
          %p203 = pneg %p55
        $region26: #{tpu_custom_call.1} parent=23 // pred_check_branch
          %205 = sbr.rel (%p203) target = $region28
        $region27: #{tpu_custom_call.1} parent=23 // pred_region
          %p206 = scmp.lt.s32.totalorder %s21, 1
          %s207 = scalar_select %p206, %s21, 1
          %p208 = scmp.lt.s32.totalorder %s23, 0
          %s209 = scalar_select %p208, %s23, 0
          %s210 = smul.addr %s207, 4
          %s211 = sadd.s32 %s209, %s210
          %s212 = smul.addr %s211, 8
          %s213 = scalar_lea.vmem %s0, %s212
        $region28: #{tpu_custom_call.1} parent=23 // pred_fallthru
          _
        // Predicated region
        $region29: #{tpu_custom_call.1} parent=23 // pred_check
          %p214 = pneg %p81
        $region30: #{tpu_custom_call.1} parent=23 // pred_check_branch
          %216 = sbr.rel (%p214) target = $region32
        $region31: #{tpu_custom_call.1} parent=23 // pred_region
          %p217 = scmp.lt.s32.totalorder %s21, 1
          %s218 = scalar_select %p217, %s21, 1
          %s219 = smul.addr %s218, 8
          %s220 = scalar_lea.vmem %s1, %s219
        $region32: #{tpu_custom_call.1} parent=23 // pred_fallthru
          _
      $region24: #{tpu_custom_call.1} parent=5 // pred_fallthru
        _
      %p221 = scmp.le.s32.totalorder 1, %s14
      %p222 = scmp.lt.s32.totalorder %s14, 3
      %p223 = pnand %p221, %p222
      %p224 = pneg %p223
      // Predicated region
      $region33: #{tpu_custom_call.1} parent=5 // pred_check
        _
      $region34: #{tpu_custom_call.1} parent=5 // pred_check_branch
        %226 = sbr.rel (%p223) target = $region36
      $region35: #{tpu_custom_call.1} parent=5 // pred_region
        %s227 = ssub.s32 %s14, 1
        // Predicated region
        $region37: #{tpu_custom_call.1} parent=35 // pred_check
          %p228 = pneg %p134
        $region38: #{tpu_custom_call.1} parent=35 // pred_check_branch
          %230 = sbr.rel (%p228) target = $region40
        $region39: #{tpu_custom_call.1} parent=35 // pred_region
          %231 = dma.done [#allocation5], 16
        $region40: #{tpu_custom_call.1} parent=35 // pred_fallthru
          _
        %232 = sfence
        %p233 = scmp.lt.s32.totalorder %s24, 1
        %s234 = scalar_select %p233, %s24, 1
        %p235 = scmp.lt.s32.totalorder %s26, 0
        %s236 = scalar_select %p235, %s26, 0
        %s237 = smul.addr %s234, 4
        %s238 = sadd.s32 %s236, %s237
        %s239 = smul.addr %s238, 8
        %s240 = scalar_lea.vmem %s0, %s239
        %p241 = pneg %p61
        %p242 = pneg %p58
        %p243 = scmp.lt.s32.totalorder %s24, 1
        %s244 = scalar_select %p243, %s24, 1
        %s245 = smul.addr %s244, 8
        %s246 = scalar_lea.vmem %s1, %s245
        %p247 = pneg %p87
        %p248 = pneg %p84
        %s249 = smul.u32 16, %s25
        %p250 = scmp.lt.s32.totalorder %s249, 15
        %s251 = scalar_select %p250, %s249, 15
        %s252 = smul.addr %s251, 8
        %s253 = scalar_lea.vmem %s2, %s252
        %p254 = pneg %p113
        %p255 = pneg %p110
        %p256 = pneg %p134
        %p257 = pneg %p131
        %p258 = pneg %p164
        %p259 = pneg %p161
        %s260 = sand.u32 %s151, 1
        %s261 = scalar_lea.sflag [#allocation4], %s260
        %s262 = sand.u32 %s151, 1
        %s263 = smul.addr %s262, 32
        %s264 = scalar_lea.vmem [#allocation6], %s263
        %p265 = scmp.lt.s32.totalorder %s24, 1
        %s266 = scalar_select %p265, %s24, 1
        %p267 = scmp.lt.s32.totalorder %s26, 0
        %s268 = scalar_select %p267, %s26, 0
        %s269 = smul.addr %s266, 4
        %s270 = sadd.s32 %s268, %s269
        %s271 = smul.addr %s270, 8
        %s272 = scalar_lea.vmem %s0, %s271
        %p273 = scmp.lt.s32.totalorder %s24, 1
        %s274 = scalar_select %p273, %s24, 1
        %s275 = smul.addr %s274, 8
        %s276 = scalar_lea.vmem %s1, %s275
        %s277 = smul.u32 16, %s25
        %p278 = scmp.lt.s32.totalorder %s277, 15
        %s279 = scalar_select %p278, %s277, 15
        %s280 = smul.addr %s279, 8
        %s281 = scalar_lea.vmem %s2, %s280
        %s282 = smul.u32 16, %s25
        %s283 = smul.u32 4, %s25
        %v284 = vld [vmem:[%s281] sm:$0xff]
        %v285 = vld [vmem:[%s281 + $0x8] sm:$0xff]
        %v286 = vld [vmem:[%s281 + $0x10] sm:$0xff]
        %v287 = vld [vmem:[%s281 + $0x18] sm:$0xff]
        %v288 = vld [vmem:[%s281 + $0x20] sm:$0xff]
        %v289 = vld [vmem:[%s281 + $0x28] sm:$0xff]
        %v290 = vld [vmem:[%s281 + $0x30] sm:$0xff]
        %v291 = vld [vmem:[%s281 + $0x38] sm:$0xff]
        %v292 = vld [vmem:[%s281 + $0x40] sm:$0xff]
        %v293 = vld [vmem:[%s281 + $0x48] sm:$0xff]
        %v294 = vld [vmem:[%s281 + $0x50] sm:$0xff]
        %v295 = vld [vmem:[%s281 + $0x58] sm:$0xff]
        %v296 = vld [vmem:[%s281 + $0x60] sm:$0xff]
        %v297 = vld [vmem:[%s281 + $0x68] sm:$0xff]
        %v298 = vld [vmem:[%s281 + $0x70] sm:$0xff]
        %v299 = vld [vmem:[%s281 + $0x78] sm:$0xff]
        %v300 = vld [vmem:[%s272] sm:$0xff]
        %v301 = vld [vmem:[%s272 + $0x8] sm:$0xff]
        %v302 = vld [vmem:[%s272 + $0x10] sm:$0xff]
        %v303 = vld [vmem:[%s272 + $0x18] sm:$0xff]
        %vm304 = vcmask 261120
        %v306 = vsel %vm304, %v284, 0
        %v309 = vsel %vm304, %v285, 0
        %v312 = vsel %vm304, %v286, 0
        %v315 = vsel %vm304, %v287, 0
        %v318 = vsel %vm304, %v288, 0
        %v321 = vsel %vm304, %v289, 0
        %v324 = vsel %vm304, %v290, 0
        %v327 = vsel %vm304, %v291, 0
        %v330 = vsel %vm304, %v292, 0
        %v333 = vsel %vm304, %v293, 0
        %v336 = vsel %vm304, %v294, 0
        %v339 = vsel %vm304, %v295, 0
        %v342 = vsel %vm304, %v296, 0
        %v345 = vsel %vm304, %v297, 0
        %v348 = vsel %vm304, %v298, 0
        %v351 = vsel %vm304, %v299, 0
        %353 = vmatprep.subr.mxu0 0.0
        %354 = vmatpush1.msra.mxu0 %v300
        %355 = vmatprep.subr.mxu0 0.0
        %356 = vmatpush1.msra.mxu0 %v301
        %357 = vmatprep.subr.mxu0 0.0
        %358 = vmatpush1.msra.mxu0 %v302
        %359 = vmatprep.subr.mxu0 0.0
        %360 = vmatpush1.msra.mxu0 %v303
        %361 = vmatprep.subr.mxu0 0.0
        %362 = vmatpush1.msra.mxu0 0.0
        %363 = vmatprep.subr.mxu0 0.0
        %364 = vmatpush1.msra.mxu0 0.0
        %365 = vmatprep.subr.mxu0 0.0
        %366 = vmatpush1.msra.mxu0 0.0
        %367 = vmatprep.subr.mxu0 0.0
        %368 = vmatpush1.msra.mxu0 0.0
        %369 = vmatprep.subr.mxu0 0.0
        %370 = vmatpush1.msra.mxu0 0.0
        %371 = vmatprep.subr.mxu0 0.0
        %372 = vmatpush1.msra.mxu0 0.0
        %373 = vmatprep.subr.mxu0 0.0
        %374 = vmatpush1.msra.mxu0 0.0
        %375 = vmatprep.subr.mxu0 0.0
        %376 = vmatpush1.msra.mxu0 0.0
        %377 = vmatprep.subr.mxu0 0.0
        %378 = vmatpush1.msra.mxu0 0.0
        %379 = vmatprep.subr.mxu0 0.0
        %380 = vmatpush1.msra.mxu0 0.0
        %381 = vmatprep.subr.mxu0 0.0
        %382 = vmatpush1.msra.mxu0 0.0
        %383 = vmatprep.subr.mxu0 0.0
        %384 = vmatpush1.msra.mxu0 0.0
        %385 = vmatprep.subr.mxu0 0.0
        %386 = vmatpush1.msra.mxu0 0.0
        %387 = vmatprep.subr.mxu0 0.0
        %388 = vmatpush1.msra.mxu0 0.0
        %389 = vmatprep.subr.mxu0 0.0
        %390 = vmatpush1.msra.mxu0 0.0
        %391 = vmatprep.subr.mxu0 0.0
        %392 = vmatpush1.msra.mxu0 0.0
        %393 = vmatprep.subr.mxu0 0.0
        %394 = vmatpush1.msra.mxu0 0.0
        %395 = vmatprep.subr.mxu0 0.0
        %396 = vmatpush1.msra.mxu0 0.0
        %397 = vmatprep.subr.mxu0 0.0
        %398 = vmatpush1.msra.mxu0 0.0
        %399 = vmatprep.subr.mxu0 0.0
        %400 = vmatpush1.msra.mxu0 0.0
        %401 = vmatprep.subr.mxu0 0.0
        %402 = vmatpush1.msra.mxu0 0.0
        %403 = vmatprep.subr.mxu0 0.0
        %404 = vmatpush1.msra.mxu0 0.0
        %405 = vmatprep.subr.mxu0 0.0
        %406 = vmatpush1.msra.mxu0 0.0
        %407 = vmatprep.subr.mxu0 0.0
        %408 = vmatpush1.msra.mxu0 0.0
        %409 = vmatprep.subr.mxu0 0.0
        %410 = vmatpush1.msra.mxu0 0.0
        %411 = vmatprep.subr.mxu0 0.0
        %412 = vmatpush1.msra.mxu0 0.0
        %413 = vmatprep.subr.mxu0 0.0
        %414 = vmatpush1.msra.mxu0 0.0
        %415 = vmatprep.subr.mxu0 0.0
        %416 = vmatpush1.msra.mxu0 0.0
        %417 = vmatprep.mubr.f32.mxu0 0.0
        %418 = vmatmul.mubr.f32.gmra.mrb[0].mxu0 %v306
        %v419 = vpop.f32.mrb[0].mxu0
        %v420 = vadd.f32 0.0, %v419
        %v421 = vpop.f32.mrb[0].mxu0
        %422 = vmatprep.mubr.f32.mxu0 0.0
        %423 = vmatmul.mubr.f32.gmra.mrb[0].mxu0 %v309
        %v424 = vpop.f32.mrb[0].mxu0
        %v425 = vadd.f32 0.0, %v424
        %v426 = vpop.f32.mrb[0].mxu0
        %427 = vmatprep.mubr.f32.mxu0 0.0
        %428 = vmatmul.mubr.f32.gmra.mrb[0].mxu0 %v312
        %v429 = vpop.f32.mrb[0].mxu0
        %v430 = vadd.f32 0.0, %v429
        %v431 = vpop.f32.mrb[0].mxu0
        %432 = vmatprep.mubr.f32.mxu0 0.0
        %433 = vmatmul.mubr.f32.gmra.mrb[0].mxu0 %v315
        %v434 = vpop.f32.mrb[0].mxu0
        %v435 = vadd.f32 0.0, %v434
        %v436 = vpop.f32.mrb[0].mxu0
        %437 = vmatprep.mubr.f32.mxu0 0.0
        %438 = vmatmul.mubr.f32.gmra.mrb[0].mxu0 %v318
        %v439 = vpop.f32.mrb[0].mxu0
        %v440 = vadd.f32 0.0, %v439
        %v441 = vpop.f32.mrb[0].mxu0
        %442 = vmatprep.mubr.f32.mxu0 0.0
        %443 = vmatmul.mubr.f32.gmra.mrb[0].mxu0 %v321
        %v444 = vpop.f32.mrb[0].mxu0
        %v445 = vadd.f32 0.0, %v444
        %v446 = vpop.f32.mrb[0].mxu0
        %447 = vmatprep.mubr.f32.mxu0 0.0
        %448 = vmatmul.mubr.f32.gmra.mrb[0].mxu0 %v324
        %v449 = vpop.f32.mrb[0].mxu0
        %v450 = vadd.f32 0.0, %v449
        %v451 = vpop.f32.mrb[0].mxu0
        %452 = vmatprep.mubr.f32.mxu0 0.0
        %453 = vmatmul.mubr.f32.gmra.mrb[0].mxu0 %v327
        %v454 = vpop.f32.mrb[0].mxu0
        %v455 = vadd.f32 0.0, %v454
        %v456 = vpop.f32.mrb[0].mxu0
        %457 = vmatprep.mubr.f32.mxu0 0.0
        %458 = vmatmul.mubr.f32.gmra.mrb[0].mxu0 %v330
        %v459 = vpop.f32.mrb[0].mxu0
        %v460 = vadd.f32 0.0, %v459
        %v461 = vpop.f32.mrb[0].mxu0
        %462 = vmatprep.mubr.f32.mxu0 0.0
        %463 = vmatmul.mubr.f32.gmra.mrb[0].mxu0 %v333
        %v464 = vpop.f32.mrb[0].mxu0
        %v465 = vadd.f32 0.0, %v464
        %v466 = vpop.f32.mrb[0].mxu0
        %467 = vmatprep.mubr.f32.mxu0 0.0
        %468 = vmatmul.mubr.f32.gmra.mrb[0].mxu0 %v336
        %v469 = vpop.f32.mrb[0].mxu0
        %v470 = vadd.f32 0.0, %v469
        %v471 = vpop.f32.mrb[0].mxu0
        %472 = vmatprep.mubr.f32.mxu0 0.0
        %473 = vmatmul.mubr.f32.gmra.mrb[0].mxu0 %v339
        %v474 = vpop.f32.mrb[0].mxu0
        %v475 = vadd.f32 0.0, %v474
        %v476 = vpop.f32.mrb[0].mxu0
        %477 = vmatprep.mubr.f32.mxu0 0.0
        %478 = vmatmul.mubr.f32.gmra.mrb[0].mxu0 %v342
        %v479 = vpop.f32.mrb[0].mxu0
        %v480 = vadd.f32 0.0, %v479
        %v481 = vpop.f32.mrb[0].mxu0
        %482 = vmatprep.mubr.f32.mxu0 0.0
        %483 = vmatmul.mubr.f32.gmra.mrb[0].mxu0 %v345
        %v484 = vpop.f32.mrb[0].mxu0
        %v485 = vadd.f32 0.0, %v484
        %v486 = vpop.f32.mrb[0].mxu0
        %487 = vmatprep.mubr.f32.mxu0 0.0
        %488 = vmatmul.mubr.f32.gmra.mrb[0].mxu0 %v348
        %v489 = vpop.f32.mrb[0].mxu0
        %v490 = vadd.f32 0.0, %v489
        %v491 = vpop.f32.mrb[0].mxu0
        %492 = vmatprep.mubr.f32.mxu0 0.0
        %493 = vmatmul.mubr.f32.gmra.mrb[0].mxu0 %v351
        %v494 = vpop.f32.mrb[0].mxu0
        %v495 = vadd.f32 0.0, %v494
        %v496 = vpop.f32.mrb[0].mxu0
        %497 = vdwg.mxu0
        %vm498 = vcmask 64512
        %499 = vst.msk [vmem:[#allocation2] sm:$0xff] %vm498, %v420
        %500 = vst.msk [vmem:[#allocation2 + $0x8] sm:$0xff] %vm498, %v425
        %501 = vst.msk [vmem:[#allocation2 + $0x10] sm:$0xff] %vm498, %v430
        %502 = vst.msk [vmem:[#allocation2 + $0x18] sm:$0xff] %vm498, %v435
        %503 = vst.msk [vmem:[#allocation2 + $0x20] sm:$0xff] %vm498, %v440
        %504 = vst.msk [vmem:[#allocation2 + $0x28] sm:$0xff] %vm498, %v445
        %505 = vst.msk [vmem:[#allocation2 + $0x30] sm:$0xff] %vm498, %v450
        %506 = vst.msk [vmem:[#allocation2 + $0x38] sm:$0xff] %vm498, %v455
        %507 = vst.msk [vmem:[#allocation2 + $0x40] sm:$0xff] %vm498, %v460
        %508 = vst.msk [vmem:[#allocation2 + $0x48] sm:$0xff] %vm498, %v465
        %509 = vst.msk [vmem:[#allocation2 + $0x50] sm:$0xff] %vm498, %v470
        %510 = vst.msk [vmem:[#allocation2 + $0x58] sm:$0xff] %vm498, %v475
        %511 = vst.msk [vmem:[#allocation2 + $0x60] sm:$0xff] %vm498, %v480
        %512 = vst.msk [vmem:[#allocation2 + $0x68] sm:$0xff] %vm498, %v485
        %513 = vst.msk [vmem:[#allocation2 + $0x70] sm:$0xff] %vm498, %v490
        %514 = vst.msk [vmem:[#allocation2 + $0x78] sm:$0xff] %vm498, %v495
        %v515 = vld [vmem:[%s276] sm:$0xff]
        %v516 = vld [vmem:[#allocation2] sm:$0xff]
        %v517 = vld [vmem:[#allocation2 + $0x8] sm:$0xff]
        %v518 = vld [vmem:[#allocation2 + $0x10] sm:$0xff]
        %v519 = vld [vmem:[#allocation2 + $0x18] sm:$0xff]
        %s520 = smul.u32 %s25, 4
        %p521 = scmp.lt.s32.totalorder %s520, 3
        %s522 = scalar_select %p521, %s520, 3
        %s523 = sld [smem:[#allocation3 + %s522]]
        %v524 = vstv %s523
        %v526 = vsel %vm304, %v515, 0
        %528 = vmatprep.subr.mxu0 0.0
        %529 = vmatpush1.msra.mxu0 %v516
        %530 = vmatprep.subr.mxu0 0.0
        %531 = vmatpush1.msra.mxu0 %v517
        %532 = vmatprep.subr.mxu0 0.0
        %533 = vmatpush1.msra.mxu0 %v518
        %534 = vmatprep.subr.mxu0 0.0
        %535 = vmatpush1.msra.mxu0 %v519
        %536 = vmatprep.subr.mxu0 0.0
        %537 = vmatpush1.msra.mxu0 0.0
        %538 = vmatprep.subr.mxu0 0.0
        %539 = vmatpush1.msra.mxu0 0.0
        %540 = vmatprep.subr.mxu0 0.0
        %541 = vmatpush1.msra.mxu0 0.0
        %542 = vmatprep.subr.mxu0 0.0
        %543 = vmatpush1.msra.mxu0 0.0
        %544 = vmatprep.subr.mxu0 0.0
        %545 = vmatpush1.msra.mxu0 0.0
        %546 = vmatprep.subr.mxu0 0.0
        %547 = vmatpush1.msra.mxu0 0.0
        %548 = vmatprep.subr.mxu0 0.0
        %549 = vmatpush1.msra.mxu0 0.0
        %550 = vmatprep.subr.mxu0 0.0
        %551 = vmatpush1.msra.mxu0 0.0
        %552 = vmatprep.subr.mxu0 0.0
        %553 = vmatpush1.msra.mxu0 0.0
        %554 = vmatprep.subr.mxu0 0.0
        %555 = vmatpush1.msra.mxu0 0.0
        %556 = vmatprep.subr.mxu0 0.0
        %557 = vmatpush1.msra.mxu0 0.0
        %558 = vmatprep.subr.mxu0 0.0
        %559 = vmatpush1.msra.mxu0 0.0
        %560 = vmatprep.subr.mxu0 0.0
        %561 = vmatpush1.msra.mxu0 0.0
        %562 = vmatprep.subr.mxu0 0.0
        %563 = vmatpush1.msra.mxu0 0.0
        %564 = vmatprep.subr.mxu0 0.0
        %565 = vmatpush1.msra.mxu0 0.0
        %566 = vmatprep.subr.mxu0 0.0
        %567 = vmatpush1.msra.mxu0 0.0
        %568 = vmatprep.subr.mxu0 0.0
        %569 = vmatpush1.msra.mxu0 0.0
        %570 = vmatprep.subr.mxu0 0.0
        %571 = vmatpush1.msra.mxu0 0.0
        %572 = vmatprep.subr.mxu0 0.0
        %573 = vmatpush1.msra.mxu0 0.0
        %574 = vmatprep.subr.mxu0 0.0
        %575 = vmatpush1.msra.mxu0 0.0
        %576 = vmatprep.subr.mxu0 0.0
        %577 = vmatpush1.msra.mxu0 0.0
        %578 = vmatprep.subr.mxu0 0.0
        %579 = vmatpush1.msra.mxu0 0.0
        %580 = vmatprep.subr.mxu0 0.0
        %581 = vmatpush1.msra.mxu0 0.0
        %582 = vmatprep.subr.mxu0 0.0
        %583 = vmatpush1.msra.mxu0 0.0
        %584 = vmatprep.subr.mxu0 0.0
        %585 = vmatpush1.msra.mxu0 0.0
        %586 = vmatprep.subr.mxu0 0.0
        %587 = vmatpush1.msra.mxu0 0.0
        %588 = vmatprep.subr.mxu0 0.0
        %589 = vmatpush1.msra.mxu0 0.0
        %590 = vmatprep.subr.mxu0 0.0
        %591 = vmatpush1.msra.mxu0 0.0
        %592 = vmatprep.mubr.f32.mxu0 0.0
        %593 = vmatmul.mubr.f32.gmra.mrb[0].mxu0 %v526
        %v594 = vpop.f32.mrb[0].mxu0
        %v595 = vadd.f32 %v524, %v594
        %v596 = vpop.f32.mrb[0].mxu0
        %597 = vdwg.mxu0
        %598 = vst.msk [vmem:[%s264] sm:$0xff] %vm498, %v595
        %v599 = vld [vmem:[#allocation2 + $0x20] sm:$0xff]
        %v600 = vld [vmem:[#allocation2 + $0x28] sm:$0xff]
        %v601 = vld [vmem:[#allocation2 + $0x30] sm:$0xff]
        %v602 = vld [vmem:[#allocation2 + $0x38] sm:$0xff]
        %s603 = sadd.s32 %s520, 1
        %p604 = scmp.lt.s32.totalorder %s603, 3
        %s605 = scalar_select %p604, %s603, 3
        %s606 = sld [smem:[#allocation3 + %s605]]
        %v607 = vstv %s606
        %608 = vmatprep.subr.mxu0 0.0
        %609 = vmatpush1.msra.mxu0 %v599
        %610 = vmatprep.subr.mxu0 0.0
        %611 = vmatpush1.msra.mxu0 %v600
        %612 = vmatprep.subr.mxu0 0.0
        %613 = vmatpush1.msra.mxu0 %v601
        %614 = vmatprep.subr.mxu0 0.0
        %615 = vmatpush1.msra.mxu0 %v602
        %616 = vmatprep.subr.mxu0 0.0
        %617 = vmatpush1.msra.mxu0 0.0
        %618 = vmatprep.subr.mxu0 0.0
        %619 = vmatpush1.msra.mxu0 0.0
        %620 = vmatprep.subr.mxu0 0.0
        %621 = vmatpush1.msra.mxu0 0.0
        %622 = vmatprep.subr.mxu0 0.0
        %623 = vmatpush1.msra.mxu0 0.0
        %624 = vmatprep.subr.mxu0 0.0
        %625 = vmatpush1.msra.mxu0 0.0
        %626 = vmatprep.subr.mxu0 0.0
        %627 = vmatpush1.msra.mxu0 0.0
        %628 = vmatprep.subr.mxu0 0.0
        %629 = vmatpush1.msra.mxu0 0.0
        %630 = vmatprep.subr.mxu0 0.0
        %631 = vmatpush1.msra.mxu0 0.0
        %632 = vmatprep.subr.mxu0 0.0
        %633 = vmatpush1.msra.mxu0 0.0
        %634 = vmatprep.subr.mxu0 0.0
        %635 = vmatpush1.msra.mxu0 0.0
        %636 = vmatprep.subr.mxu0 0.0
        %637 = vmatpush1.msra.mxu0 0.0
        %638 = vmatprep.subr.mxu0 0.0
        %639 = vmatpush1.msra.mxu0 0.0
        %640 = vmatprep.subr.mxu0 0.0
        %641 = vmatpush1.msra.mxu0 0.0
        %642 = vmatprep.subr.mxu0 0.0
        %643 = vmatpush1.msra.mxu0 0.0
        %644 = vmatprep.subr.mxu0 0.0
        %645 = vmatpush1.msra.mxu0 0.0
        %646 = vmatprep.subr.mxu0 0.0
        %647 = vmatpush1.msra.mxu0 0.0
        %648 = vmatprep.subr.mxu0 0.0
        %649 = vmatpush1.msra.mxu0 0.0
        %650 = vmatprep.subr.mxu0 0.0
        %651 = vmatpush1.msra.mxu0 0.0
        %652 = vmatprep.subr.mxu0 0.0
        %653 = vmatpush1.msra.mxu0 0.0
        %654 = vmatprep.subr.mxu0 0.0
        %655 = vmatpush1.msra.mxu0 0.0
        %656 = vmatprep.subr.mxu0 0.0
        %657 = vmatpush1.msra.mxu0 0.0
        %658 = vmatprep.subr.mxu0 0.0
        %659 = vmatpush1.msra.mxu0 0.0
        %660 = vmatprep.subr.mxu0 0.0
        %661 = vmatpush1.msra.mxu0 0.0
        %662 = vmatprep.subr.mxu0 0.0
        %663 = vmatpush1.msra.mxu0 0.0
        %664 = vmatprep.subr.mxu0 0.0
        %665 = vmatpush1.msra.mxu0 0.0
        %666 = vmatprep.subr.mxu0 0.0
        %667 = vmatpush1.msra.mxu0 0.0
        %668 = vmatprep.subr.mxu0 0.0
        %669 = vmatpush1.msra.mxu0 0.0
        %670 = vmatprep.subr.mxu0 0.0
        %671 = vmatpush1.msra.mxu0 0.0
        %672 = vmatprep.mubr.f32.mxu0 0.0
        %673 = vmatmul.mubr.f32.gmra.mrb[0].mxu0 %v526
        %v674 = vpop.f32.mrb[0].mxu0
        %v675 = vadd.f32 %v607, %v674
        %v676 = vpop.f32.mrb[0].mxu0
        %677 = vdwg.mxu0
        %s678 = scalar_lea.vmem %s264, 8 [#allocation6]
        %679 = vst.msk [vmem:[%s678] sm:$0xff] %vm498, %v675
        %v680 = vld [vmem:[#allocation2 + $0x40] sm:$0xff]
        %v681 = vld [vmem:[#allocation2 + $0x48] sm:$0xff]
        %v682 = vld [vmem:[#allocation2 + $0x50] sm:$0xff]
        %v683 = vld [vmem:[#allocation2 + $0x58] sm:$0xff]
        %s684 = sadd.s32 %s520, 2
        %p685 = scmp.lt.s32.totalorder %s684, 3
        %s686 = scalar_select %p685, %s684, 3
        %s687 = sld [smem:[#allocation3 + %s686]]
        %v688 = vstv %s687
        %689 = vmatprep.subr.mxu0 0.0
        %690 = vmatpush1.msra.mxu0 %v680
        %691 = vmatprep.subr.mxu0 0.0
        %692 = vmatpush1.msra.mxu0 %v681
        %693 = vmatprep.subr.mxu0 0.0
        %694 = vmatpush1.msra.mxu0 %v682
        %695 = vmatprep.subr.mxu0 0.0
        %696 = vmatpush1.msra.mxu0 %v683
        %697 = vmatprep.subr.mxu0 0.0
        %698 = vmatpush1.msra.mxu0 0.0
        %699 = vmatprep.subr.mxu0 0.0
        %700 = vmatpush1.msra.mxu0 0.0
        %701 = vmatprep.subr.mxu0 0.0
        %702 = vmatpush1.msra.mxu0 0.0
        %703 = vmatprep.subr.mxu0 0.0
        %704 = vmatpush1.msra.mxu0 0.0
        %705 = vmatprep.subr.mxu0 0.0
        %706 = vmatpush1.msra.mxu0 0.0
        %707 = vmatprep.subr.mxu0 0.0
        %708 = vmatpush1.msra.mxu0 0.0
        %709 = vmatprep.subr.mxu0 0.0
        %710 = vmatpush1.msra.mxu0 0.0
        %711 = vmatprep.subr.mxu0 0.0
        %712 = vmatpush1.msra.mxu0 0.0
        %713 = vmatprep.subr.mxu0 0.0
        %714 = vmatpush1.msra.mxu0 0.0
        %715 = vmatprep.subr.mxu0 0.0
        %716 = vmatpush1.msra.mxu0 0.0
        %717 = vmatprep.subr.mxu0 0.0
        %718 = vmatpush1.msra.mxu0 0.0
        %719 = vmatprep.subr.mxu0 0.0
        %720 = vmatpush1.msra.mxu0 0.0
        %721 = vmatprep.subr.mxu0 0.0
        %722 = vmatpush1.msra.mxu0 0.0
        %723 = vmatprep.subr.mxu0 0.0
        %724 = vmatpush1.msra.mxu0 0.0
        %725 = vmatprep.subr.mxu0 0.0
        %726 = vmatpush1.msra.mxu0 0.0
        %727 = vmatprep.subr.mxu0 0.0
        %728 = vmatpush1.msra.mxu0 0.0
        %729 = vmatprep.subr.mxu0 0.0
        %730 = vmatpush1.msra.mxu0 0.0
        %731 = vmatprep.subr.mxu0 0.0
        %732 = vmatpush1.msra.mxu0 0.0
        %733 = vmatprep.subr.mxu0 0.0
        %734 = vmatpush1.msra.mxu0 0.0
        %735 = vmatprep.subr.mxu0 0.0
        %736 = vmatpush1.msra.mxu0 0.0
        %737 = vmatprep.subr.mxu0 0.0
        %738 = vmatpush1.msra.mxu0 0.0
        %739 = vmatprep.subr.mxu0 0.0
        %740 = vmatpush1.msra.mxu0 0.0
        %741 = vmatprep.subr.mxu0 0.0
        %742 = vmatpush1.msra.mxu0 0.0
        %743 = vmatprep.subr.mxu0 0.0
        %744 = vmatpush1.msra.mxu0 0.0
        %745 = vmatprep.subr.mxu0 0.0
        %746 = vmatpush1.msra.mxu0 0.0
        %747 = vmatprep.subr.mxu0 0.0
        %748 = vmatpush1.msra.mxu0 0.0
        %749 = vmatprep.subr.mxu0 0.0
        %750 = vmatpush1.msra.mxu0 0.0
        %751 = vmatprep.subr.mxu0 0.0
        %752 = vmatpush1.msra.mxu0 0.0
        %753 = vmatprep.mubr.f32.mxu0 0.0
        %754 = vmatmul.mubr.f32.gmra.mrb[0].mxu0 %v526
        %v755 = vpop.f32.mrb[0].mxu0
        %v756 = vadd.f32 %v688, %v755
        %v757 = vpop.f32.mrb[0].mxu0
        %758 = vdwg.mxu0
        %s759 = scalar_lea.vmem %s264, 16 [#allocation6]
        %760 = vst.msk [vmem:[%s759] sm:$0xff] %vm498, %v756
        %v761 = vld [vmem:[#allocation2 + $0x60] sm:$0xff]
        %v762 = vld [vmem:[#allocation2 + $0x68] sm:$0xff]
        %v763 = vld [vmem:[#allocation2 + $0x70] sm:$0xff]
        %v764 = vld [vmem:[#allocation2 + $0x78] sm:$0xff]
        %s765 = sadd.s32 %s520, 3
        %p766 = scmp.lt.s32.totalorder %s765, 3
        %s767 = scalar_select %p766, %s765, 3
        %s768 = sld [smem:[#allocation3 + %s767]]
        %v769 = vstv %s768
        %770 = vmatprep.subr.mxu0 0.0
        %771 = vmatpush1.msra.mxu0 %v761
        %772 = vmatprep.subr.mxu0 0.0
        %773 = vmatpush1.msra.mxu0 %v762
        %774 = vmatprep.subr.mxu0 0.0
        %775 = vmatpush1.msra.mxu0 %v763
        %776 = vmatprep.subr.mxu0 0.0
        %777 = vmatpush1.msra.mxu0 %v764
        %778 = vmatprep.subr.mxu0 0.0
        %779 = vmatpush1.msra.mxu0 0.0
        %780 = vmatprep.subr.mxu0 0.0
        %781 = vmatpush1.msra.mxu0 0.0
        %782 = vmatprep.subr.mxu0 0.0
        %783 = vmatpush1.msra.mxu0 0.0
        %784 = vmatprep.subr.mxu0 0.0
        %785 = vmatpush1.msra.mxu0 0.0
        %786 = vmatprep.subr.mxu0 0.0
        %787 = vmatpush1.msra.mxu0 0.0
        %788 = vmatprep.subr.mxu0 0.0
        %789 = vmatpush1.msra.mxu0 0.0
        %790 = vmatprep.subr.mxu0 0.0
        %791 = vmatpush1.msra.mxu0 0.0
        %792 = vmatprep.subr.mxu0 0.0
        %793 = vmatpush1.msra.mxu0 0.0
        %794 = vmatprep.subr.mxu0 0.0
        %795 = vmatpush1.msra.mxu0 0.0
        %796 = vmatprep.subr.mxu0 0.0
        %797 = vmatpush1.msra.mxu0 0.0
        %798 = vmatprep.subr.mxu0 0.0
        %799 = vmatpush1.msra.mxu0 0.0
        %800 = vmatprep.subr.mxu0 0.0
        %801 = vmatpush1.msra.mxu0 0.0
        %802 = vmatprep.subr.mxu0 0.0
        %803 = vmatpush1.msra.mxu0 0.0
        %804 = vmatprep.subr.mxu0 0.0
        %805 = vmatpush1.msra.mxu0 0.0
        %806 = vmatprep.subr.mxu0 0.0
        %807 = vmatpush1.msra.mxu0 0.0
        %808 = vmatprep.subr.mxu0 0.0
        %809 = vmatpush1.msra.mxu0 0.0
        %810 = vmatprep.subr.mxu0 0.0
        %811 = vmatpush1.msra.mxu0 0.0
        %812 = vmatprep.subr.mxu0 0.0
        %813 = vmatpush1.msra.mxu0 0.0
        %814 = vmatprep.subr.mxu0 0.0
        %815 = vmatpush1.msra.mxu0 0.0
        %816 = vmatprep.subr.mxu0 0.0
        %817 = vmatpush1.msra.mxu0 0.0
        %818 = vmatprep.subr.mxu0 0.0
        %819 = vmatpush1.msra.mxu0 0.0
        %820 = vmatprep.subr.mxu0 0.0
        %821 = vmatpush1.msra.mxu0 0.0
        %822 = vmatprep.subr.mxu0 0.0
        %823 = vmatpush1.msra.mxu0 0.0
        %824 = vmatprep.subr.mxu0 0.0
        %825 = vmatpush1.msra.mxu0 0.0
        %826 = vmatprep.subr.mxu0 0.0
        %827 = vmatpush1.msra.mxu0 0.0
        %828 = vmatprep.subr.mxu0 0.0
        %829 = vmatpush1.msra.mxu0 0.0
        %830 = vmatprep.subr.mxu0 0.0
        %831 = vmatpush1.msra.mxu0 0.0
        %832 = vmatprep.subr.mxu0 0.0
        %833 = vmatpush1.msra.mxu0 0.0
        %834 = vmatprep.mubr.f32.mxu0 0.0
        %835 = vmatmul.mubr.f32.gmra.mrb[0].mxu0 %v526
        %v836 = vpop.f32.mrb[0].mxu0
        %v837 = vadd.f32 %v769, %v836
        %v838 = vpop.f32.mrb[0].mxu0
        %839 = vdwg.mxu0
        %s840 = scalar_lea.vmem %s264, 24 [#allocation6]
        %841 = vst.msk [vmem:[%s840] sm:$0xff] %vm498, %v837
        %s842 = sand.u32 %s151, 1
        %s843 = scalar_lea.sflag [#allocation4], %s842
        %s844 = sand.u32 %s151, 1
        %s845 = smul.addr %s844, 32
        %s846 = scalar_lea.vmem [#allocation6], %s845
        // Predicated region
        $region41: #{tpu_custom_call.1} parent=35 // pred_check
          %p847 = pneg %p161
        $region42: #{tpu_custom_call.1} parent=35 // pred_check_branch
          %849 = sbr.rel (%p847) target = $region44
        $region43: #{tpu_custom_call.1} parent=35 // pred_region
          %s850 = smul.u32 4, %s25
          %s852 = ssub.s32 512, 512
          %853 = vsyncadd %s843, %s852
          %s854 = sadd.s32 %s26, %s850
          %s855 = smul.addr %s24, 4
          %s856 = sadd.s32 %s854, %s855
          %s857 = smul.addr %s856, 128
          %s858 = scalar_lea.hbm %s4, %s857
          %s859 = sshll.u32 %s846, 4
          %s860 = int_to_ptr.vmem [resolvable:$true] %s859
          %865 = dma.vmem_to_hbm [thread:$0]  %s860, 512, %s858, %s843, 128, 128, 8
        $region44: #{tpu_custom_call.1} parent=35 // pred_fallthru
          _
      $region36: #{tpu_custom_call.1} parent=5 // pred_fallthru
        _
      %p866 = scmp.le.s32.totalorder 2, %s14
      // Predicated region
      $region45: #{tpu_custom_call.1} parent=5 // pred_check
        %p867 = pneg %p866
      $region46: #{tpu_custom_call.1} parent=5 // pred_check_branch
        %869 = sbr.rel (%p867) target = $region48
      $region47: #{tpu_custom_call.1} parent=5 // pred_region
        %s870 = ssub.s32 %s14, 2
        // Predicated region
        $region49: #{tpu_custom_call.1} parent=47 // pred_check
          %p871 = pneg %p167
        $region50: #{tpu_custom_call.1} parent=47 // pred_check_branch
          %873 = sbr.rel (%p871) target = $region52
        $region51: #{tpu_custom_call.1} parent=47 // pred_region
          %s874 = sand.u32 %s152, 1
          %s875 = scalar_lea.sflag [#allocation4], %s874
          %s876 = sand.u32 %s152, 1
          %s877 = smul.addr %s876, 32
          %s878 = scalar_lea.vmem [#allocation6], %s877
          %879 = dma.done %s875, 512
        $region52: #{tpu_custom_call.1} parent=47 // pred_fallthru
          _
      $region48: #{tpu_custom_call.1} parent=5 // pred_fallthru
        _
    $region6: #{tpu_custom_call.1} parent=1 // loop_footer
      %s18 = sadd.s32 1, %s14
    $region7: #{tpu_custom_call.1} parent=1 // loop_footer_branch
      %13 = sbr.rel target = $region3
    $region8: #{tpu_custom_call.1} parent=1 // loop_exit
      _
    %880 = vsyncpa [#allocation4], 1
    %s881 = scalar_lea.sflag [#allocation4], 1
    %882 = vsyncpa %s881, 1
    %883 = vsyncpa [#allocation5], 1
    %s884 = scalar_lea.sflag [#allocation5], 1
    %885 = vsyncpa %s884, 1

</llo_original>
